<compile_context>
chip_gen: v5e
topology: v5e:2x2
jax: 0.10.0
libtpu: 0.0.40
codegen_flags: <defaults>
</compile_context>

<pallas_src>
from functools import partial

import jax
import jax.numpy as jnp
from jax import lax
from jax.experimental import pallas as pl
from jax.experimental.pallas import tpu as pltpu

N_STEPS = 32  # fixed dopri5 steps over t in [0, 1]


def _round_up(n, m):
    return ((n + m - 1) // m) * m


def _device_kind():
    try:
        return jax.devices()[0].device_kind.lower()
    except Exception:
        return ""


def _default_bf16_act():
    # v5e has no bf16 VPU/EUP -> keep tanh in f32 there; bf16 tanh on v6e/v7x.
    return "v5" not in _device_kind()


def _ode_kernel(x_ref, w1_ref, b1_ref, w2_ref, b2_ref, o_ref, *,
                bf16_act: bool, hoist_bias: bool):
    TB = x_ref.shape[0]
    HP = w1_ref.shape[1]
    DP = w2_ref.shape[1]

    # Weights arrive already padded + bf16 (cast once in prepare step).
    w1 = w1_ref[...]
    w2 = w2_ref[...]

    if hoist_bias:
        # Cheap at small TB (few vregs); avoids re-broadcasting 6x per step.
        b1 = jnp.broadcast_to(b1_ref[...], (TB, HP))
        b2 = jnp.broadcast_to(b2_ref[...], (TB, DP))
    else:
        # Sublane-broadcast at the add; does not pin vregs across the loop.
        b1 = b1_ref[...]
        b2 = b2_ref[...]

    def f(y):
        pre = jnp.dot(y.astype(jnp.bfloat16), w1,
                      preferred_element_type=jnp.float32) + b1
        if bf16_act:
            h = jnp.tanh(pre.astype(jnp.bfloat16))     # bf16 EUP (v6e/v7x)
        else:
            h = jnp.tanh(pre).astype(jnp.bfloat16)     # f32 EUP (v5e)
        return jnp.dot(h, w2, preferred_element_type=jnp.float32) + b2

    y0 = x_ref[...].astype(jnp.float32)
    dt = jnp.float32(1.0 / N_STEPS)

    def step(_, y):
        # Dormand-Prince 5(4) Butcher tableau (fixed step, 5th-order solution).
        k1 = f(y)
        k2 = f(y + dt * (1.0 / 5.0) * k1)
        k3 = f(y + dt * (3.0 / 40.0 * k1 + 9.0 / 40.0 * k2))
        k4 = f(y + dt * (44.0 / 45.0 * k1 - 56.0 / 15.0 * k2 + 32.0 / 9.0 * k3))
        k5 = f(y + dt * (19372.0 / 6561.0 * k1 - 25360.0 / 2187.0 * k2
                         + 64448.0 / 6561.0 * k3 - 212.0 / 729.0 * k4))
        k6 = f(y + dt * (9017.0 / 3168.0 * k1 - 355.0 / 33.0 * k2
                         + 46732.0 / 5247.0 * k3 + 49.0 / 176.0 * k4
                         - 5103.0 / 18656.0 * k5))
        return y + dt * (35.0 / 384.0 * k1 + 500.0 / 1113.0 * k3
                         + 125.0 / 192.0 * k4 - 2187.0 / 6784.0 * k5
                         + 11.0 / 84.0 * k6)

    y = lax.fori_loop(0, N_STEPS, step, y0)
    o_ref[...] = y.astype(o_ref.dtype)


def pad_params(w1, b1, w2, b2, *, weight_dtype=jnp.bfloat16):
    """Pad feature dims to 128 lanes and cast weights to bf16 -- do this ONCE
    at init (not per call).  Padding is exact: zero rows/cols + tanh(0)=0 keep
    the padded feature columns at zero through the whole integration."""
    D, H = w1.shape
    DP = _round_up(max(D, 128), 128)
    HP = _round_up(max(H, 128), 128)
    w1p = jnp.zeros((DP, HP), weight_dtype).at[:D, :H].set(w1.astype(weight_dtype))
    b1p = jnp.zeros((1, HP), jnp.float32).at[:, :H].set(b1.astype(jnp.float32))
    w2p = jnp.zeros((HP, DP), weight_dtype).at[:H, :D].set(w2.astype(weight_dtype))
    b2p = jnp.zeros((1, DP), jnp.float32).at[:, :D].set(b2.astype(jnp.float32))
    return (w1p, b1p, w2p, b2p), (D, H)


def gwb_ode_net_padded(x, padded_params, dims, *, batch_tile=32, min_tiles=2,
                       bf16_act=None):
    """x: (B, D) float32.  padded_params/dims from pad_params().  Returns y(1)."""
    w1p, b1p, w2p, b2p = padded_params
    D, H = dims
    B, Dx = x.shape
    assert Dx == D
    DP, HP = w1p.shape
    if bf16_act is None:
        bf16_act = _default_bf16_act()

    # Balanced batch tiling (multiple of 8 sublanes), >= min_tiles tiles so the
    # "parallel" axis can be split across both TensorCores on v7x.
    n_tiles = max(pl.cdiv(B, batch_tile), min_tiles)
    TB = _round_up(pl.cdiv(B, n_tiles), 8)
    BP = n_tiles * TB

    # Per-call state pad only (weights were padded once in pad_params).
    xp = jnp.zeros((BP, DP), x.dtype).at[:B, :D].set(x)

    wbytes = (w1p.size + w2p.size) * jnp.dtype(w1p.dtype).itemsize
    bbytes = (b1p.size + b2p.size) * 4
    cost = pl.CostEstimate(
        flops=int(n_tiles * N_STEPS * 6 * 4 * TB * DP * HP),
        transcendentals=int(n_tiles * N_STEPS * 6 * TB * HP),
        bytes_accessed=int(2 * BP * DP * 4 + wbytes + bbytes))

    kernel = partial(_ode_kernel, bf16_act=bf16_act, hoist_bias=(TB <= 32))

    out = pl.pallas_call(
        kernel,
        out_shape=jax.ShapeDtypeStruct((BP, DP), x.dtype),
        grid=(n_tiles,),
        in_specs=[
            pl.BlockSpec((TB, DP), lambda i: (i, 0)),   # state tile
            # Constant across the grid -> single-buffered, stays resident.
            pl.BlockSpec((DP, HP), lambda i: (0, 0), pipeline_mode=pl.Buffered(1)),
            pl.BlockSpec((1, HP), lambda i: (0, 0), pipeline_mode=pl.Buffered(1)),
            pl.BlockSpec((HP, DP), lambda i: (0, 0), pipeline_mode=pl.Buffered(1)),
            pl.BlockSpec((1, DP), lambda i: (0, 0), pipeline_mode=pl.Buffered(1)),
        ],
        out_specs=pl.BlockSpec((TB, DP), lambda i: (i, 0)),
        compiler_params=pltpu.CompilerParams(
            dimension_semantics=("parallel",)),
        cost_estimate=cost,
    )(xp, w1p, b1p, w2p, b2p)
    return out[:B, :D]


def gwb_ode_net(x, w1, b1, w2, b2, **kwargs):
    """Convenience wrapper: pads params per call (prefer pad_params once)."""
    padded, dims = pad_params(w1, b1, w2, b2)
    return gwb_ode_net_padded(x, padded, dims, **kwargs)


def init_params(key, D, H):
    """Deterministic PyTorch-Linear-style init: U(-1/sqrt(fan_in), 1/sqrt(fan_in))."""
    k1, k2, k3, k4 = jax.random.split(key, 4)
    lim1 = 1.0 / jnp.sqrt(D)
    lim2 = 1.0 / jnp.sqrt(H)
    w1 = jax.random.uniform(k1, (D, H), jnp.float32, -lim1, lim1)
    b1 = jax.random.uniform(k2, (1, H), jnp.float32, -lim1, lim1)
    w2 = jax.random.uniform(k3, (H, D), jnp.float32, -lim2, lim2)
    b2 = jax.random.uniform(k4, (1, D), jnp.float32, -lim2, lim2)
    return w1, b1, w2, b2


if __name__ == "__main__":
    key = jax.random.PRNGKey(0)
    kx, kp = jax.random.split(key)

    B, D, H = 8, 32, 32
    x = jax.random.normal(kx, (B, D), jnp.float32)
    w1, b1, w2, b2 = init_params(kp, D, H)

    bf16_act = _default_bf16_act()
    padded, dims = pad_params(w1, b1, w2, b2)   # done once, not per call
    y = gwb_ode_net_padded(x, padded, dims, bf16_act=bf16_act)
    jax.block_until_ready(y)

    # Pure-JAX reference of the same fixed-step dopri5 with matching bf16
    # MXU-operand / f32-accumulation semantics (and matching tanh precision).
    w1b = w1.astype(jnp.bfloat16)
    w2b = w2.astype(jnp.bfloat16)

    def f_ref(y_):
        pre = jnp.dot(y_.astype(jnp.bfloat16), w1b,
                      preferred_element_type=jnp.float32) + b1
        if bf16_act:
            h = jnp.tanh(pre.astype(jnp.bfloat16))
        else:
            h = jnp.tanh(pre).astype(jnp.bfloat16)
        return jnp.dot(h, w2b, preferred_element_type=jnp.float32) + b2

    dt = 1.0 / N_STEPS
    yr = x.astype(jnp.float32)
    for _ in range(N_STEPS):
        k1 = f_ref(yr)
        k2 = f_ref(yr + dt * (1 / 5) * k1)
        k3 = f_ref(yr + dt * (3 / 40 * k1 + 9 / 40 * k2))
        k4 = f_ref(yr + dt * (44 / 45 * k1 - 56 / 15 * k2 + 32 / 9 * k3))
        k5 = f_ref(yr + dt * (19372 / 6561 * k1 - 25360 / 2187 * k2
                              + 64448 / 6561 * k3 - 212 / 729 * k4))
        k6 = f_ref(yr + dt * (9017 / 3168 * k1 - 355 / 33 * k2
                              + 46732 / 5247 * k3 + 49 / 176 * k4
                              - 5103 / 18656 * k5))
        yr = yr + dt * (35 / 384 * k1 + 500 / 1113 * k3 + 125 / 192 * k4
                        - 2187 / 6784 * k5 + 11 / 84 * k6)

    assert y.shape == x.shape
    # bf16 tanh (EUP) vs XLA's upcast tanh can differ by a few bf16 ulps,
    # compounded over 32 steps x 6 stages -> loose-ish tolerance.
    assert jnp.allclose(y, yr, atol=2e-2, rtol=2e-2), float(
        jnp.max(jnp.abs(y - yr)))
    print("KERNEL_OK")
</pallas_src>

<mosaic_0001>
module attributes {stable_mosaic.version = 11 : i64} {
  func.func @_ode_kernel(%arg0: i32, %arg1: memref<8x128xf32, #tpu.memory_space<vmem>>, %arg2: memref<128x128xbf16, #tpu.memory_space<vmem>>, %arg3: memref<1x128xf32, #tpu.memory_space<vmem>>, %arg4: memref<128x128xbf16, #tpu.memory_space<vmem>>, %arg5: memref<1x128xf32, #tpu.memory_space<vmem>>, %arg6: memref<8x128xf32, #tpu.memory_space<vmem>>) attributes {dimension_semantics = [#tpu.dimension_semantics<parallel>], iteration_bounds = array<i64: 2>, scalar_prefetch = 0 : i64, scratch_operands = 0 : i64, tpu.core_type = #tpu.core_type<tc>, window_params = [{transform_indices = @transform_0, window_bounds = array<i64: 8, 128>}, {pipeline_mode = #tpu.pipeline_mode<synchronous>, transform_indices = @transform_1, window_bounds = array<i64: 128, 128>}, {pipeline_mode = #tpu.pipeline_mode<synchronous>, transform_indices = @transform_2, window_bounds = array<i64: 1, 128>}, {pipeline_mode = #tpu.pipeline_mode<synchronous>, transform_indices = @transform_3, window_bounds = array<i64: 128, 128>}, {pipeline_mode = #tpu.pipeline_mode<synchronous>, transform_indices = @transform_4, window_bounds = array<i64: 1, 128>}, {transform_indices = @transform_5, window_bounds = array<i64: 8, 128>}]} {
    %c0 = arith.constant 0 : index
    %c0_0 = arith.constant 0 : index
    %0 = vector.load %arg2[%c0, %c0_0] : memref<128x128xbf16, #tpu.memory_space<vmem>>, vector<128x128xbf16>
    %c0_1 = arith.constant 0 : index
    %c0_2 = arith.constant 0 : index
    %1 = vector.load %arg4[%c0_1, %c0_2] : memref<128x128xbf16, #tpu.memory_space<vmem>>, vector<128x128xbf16>
    %c0_3 = arith.constant 0 : index
    %c0_4 = arith.constant 0 : index
    %2 = vector.load %arg3[%c0_3, %c0_4] : memref<1x128xf32, #tpu.memory_space<vmem>>, vector<1x128xf32>
    %3 = vector.shape_cast %2 : vector<1x128xf32> to vector<1x128xf32>
    %4 = vector.broadcast %3 : vector<1x128xf32> to vector<8x128xf32>
    %c0_5 = arith.constant 0 : index
    %c0_6 = arith.constant 0 : index
    %5 = vector.load %arg5[%c0_5, %c0_6] : memref<1x128xf32, #tpu.memory_space<vmem>>, vector<1x128xf32>
    %6 = vector.shape_cast %5 : vector<1x128xf32> to vector<1x128xf32>
    %7 = vector.broadcast %6 : vector<1x128xf32> to vector<8x128xf32>
    %c0_7 = arith.constant 0 : index
    %c0_8 = arith.constant 0 : index
    %8 = vector.load %arg1[%c0_7, %c0_8] : memref<8x128xf32, #tpu.memory_space<vmem>>, vector<8x128xf32>
    %cst = arith.constant 3.125000e-02 : f32
    %c0_i32 = arith.constant 0 : i32
    %c32_i32 = arith.constant 32 : i32
    %9 = arith.addi %c0_i32, %c32_i32 : i32
    %c1_i32 = arith.constant 1 : i32
    %10 = scf.for %arg7 = %c0_i32 to %9 step %c1_i32 iter_args(%arg8 = %8) -> (vector<8x128xf32>)  : i32 {
      %12 = arith.truncf %arg8 : vector<8x128xf32> to vector<8x128xbf16>
      %cst_11 = arith.constant dense<0.000000e+00> : vector<8x128xf32>
      %13 = tpu.matmul %12, %0, %cst_11 {dimension_numbers = #tpu.dot_dimension_numbers<[1], [0], [0], [1], [0, 0, 1, 1], [], []>} : vector<8x128xbf16>, vector<128x128xbf16>, vector<8x128xf32> -> vector<8x128xf32>
      %14 = arith.addf %13, %4 : vector<8x128xf32>
      %15 = arith.truncf %14 : vector<8x128xf32> to vector<8x128xbf16>
      %16 = math.tanh %15 : vector<8x128xbf16>
      %cst_12 = arith.constant dense<0.000000e+00> : vector<8x128xf32>
      %17 = tpu.matmul %16, %1, %cst_12 {dimension_numbers = #tpu.dot_dimension_numbers<[1], [0], [0], [1], [0, 0, 1, 1], [], []>} : vector<8x128xbf16>, vector<128x128xbf16>, vector<8x128xf32> -> vector<8x128xf32>
      %18 = arith.addf %17, %7 : vector<8x128xf32>
      %cst_13 = arith.constant 2.000000e-01 : f32
      %19 = arith.mulf %cst, %cst_13 : f32
      %20 = vector.broadcast %19 : f32 to vector<8x128xf32>
      %21 = arith.mulf %20, %18 : vector<8x128xf32>
      %22 = arith.addf %arg8, %21 : vector<8x128xf32>
      %23 = arith.truncf %22 : vector<8x128xf32> to vector<8x128xbf16>
      %cst_14 = arith.constant dense<0.000000e+00> : vector<8x128xf32>
      %24 = tpu.matmul %23, %0, %cst_14 {dimension_numbers = #tpu.dot_dimension_numbers<[1], [0], [0], [1], [0, 0, 1, 1], [], []>} : vector<8x128xbf16>, vector<128x128xbf16>, vector<8x128xf32> -> vector<8x128xf32>
      %25 = arith.addf %24, %4 : vector<8x128xf32>
      %26 = arith.truncf %25 : vector<8x128xf32> to vector<8x128xbf16>
      %27 = math.tanh %26 : vector<8x128xbf16>
      %cst_15 = arith.constant dense<0.000000e+00> : vector<8x128xf32>
      %28 = tpu.matmul %27, %1, %cst_15 {dimension_numbers = #tpu.dot_dimension_numbers<[1], [0], [0], [1], [0, 0, 1, 1], [], []>} : vector<8x128xbf16>, vector<128x128xbf16>, vector<8x128xf32> -> vector<8x128xf32>
      %29 = arith.addf %28, %7 : vector<8x128xf32>
      %cst_16 = arith.constant 7.500000e-02 : f32
      %30 = vector.broadcast %cst_16 : f32 to vector<8x128xf32>
      %31 = arith.mulf %30, %18 : vector<8x128xf32>
      %cst_17 = arith.constant 2.250000e-01 : f32
      %32 = vector.broadcast %cst_17 : f32 to vector<8x128xf32>
      %33 = arith.mulf %32, %29 : vector<8x128xf32>
      %34 = arith.addf %31, %33 : vector<8x128xf32>
      %35 = vector.broadcast %cst : f32 to vector<8x128xf32>
      %36 = arith.mulf %35, %34 : vector<8x128xf32>
      %37 = arith.addf %arg8, %36 : vector<8x128xf32>
      %38 = arith.truncf %37 : vector<8x128xf32> to vector<8x128xbf16>
      %cst_18 = arith.constant dense<0.000000e+00> : vector<8x128xf32>
      %39 = tpu.matmul %38, %0, %cst_18 {dimension_numbers = #tpu.dot_dimension_numbers<[1], [0], [0], [1], [0, 0, 1, 1], [], []>} : vector<8x128xbf16>, vector<128x128xbf16>, vector<8x128xf32> -> vector<8x128xf32>
      %40 = arith.addf %39, %4 : vector<8x128xf32>
      %41 = arith.truncf %40 : vector<8x128xf32> to vector<8x128xbf16>
      %42 = math.tanh %41 : vector<8x128xbf16>
      %cst_19 = arith.constant dense<0.000000e+00> : vector<8x128xf32>
      %43 = tpu.matmul %42, %1, %cst_19 {dimension_numbers = #tpu.dot_dimension_numbers<[1], [0], [0], [1], [0, 0, 1, 1], [], []>} : vector<8x128xbf16>, vector<128x128xbf16>, vector<8x128xf32> -> vector<8x128xf32>
      %44 = arith.addf %43, %7 : vector<8x128xf32>
      %cst_20 = arith.constant 0.977777779 : f32
      %45 = vector.broadcast %cst_20 : f32 to vector<8x128xf32>
      %46 = arith.mulf %45, %18 : vector<8x128xf32>
      %cst_21 = arith.constant 3.73333335 : f32
      %47 = vector.broadcast %cst_21 : f32 to vector<8x128xf32>
      %48 = arith.mulf %47, %29 : vector<8x128xf32>
      %49 = arith.subf %46, %48 : vector<8x128xf32>
      %cst_22 = arith.constant 3.55555558 : f32
      %50 = vector.broadcast %cst_22 : f32 to vector<8x128xf32>
      %51 = arith.mulf %50, %44 : vector<8x128xf32>
      %52 = arith.addf %49, %51 : vector<8x128xf32>
      %53 = vector.broadcast %cst : f32 to vector<8x128xf32>
      %54 = arith.mulf %53, %52 : vector<8x128xf32>
      %55 = arith.addf %arg8, %54 : vector<8x128xf32>
      %56 = arith.truncf %55 : vector<8x128xf32> to vector<8x128xbf16>
      %cst_23 = arith.constant dense<0.000000e+00> : vector<8x128xf32>
      %57 = tpu.matmul %56, %0, %cst_23 {dimension_numbers = #tpu.dot_dimension_numbers<[1], [0], [0], [1], [0, 0, 1, 1], [], []>} : vector<8x128xbf16>, vector<128x128xbf16>, vector<8x128xf32> -> vector<8x128xf32>
      %58 = arith.addf %57, %4 : vector<8x128xf32>
      %59 = arith.truncf %58 : vector<8x128xf32> to vector<8x128xbf16>
      %60 = math.tanh %59 : vector<8x128xbf16>
      %cst_24 = arith.constant dense<0.000000e+00> : vector<8x128xf32>
      %61 = tpu.matmul %60, %1, %cst_24 {dimension_numbers = #tpu.dot_dimension_numbers<[1], [0], [0], [1], [0, 0, 1, 1], [], []>} : vector<8x128xbf16>, vector<128x128xbf16>, vector<8x128xf32> -> vector<8x128xf32>
      %62 = arith.addf %61, %7 : vector<8x128xf32>
      %cst_25 = arith.constant 2.95259857 : f32
      %63 = vector.broadcast %cst_25 : f32 to vector<8x128xf32>
      %64 = arith.mulf %63, %18 : vector<8x128xf32>
      %cst_26 = arith.constant 11.5957937 : f32
      %65 = vector.broadcast %cst_26 : f32 to vector<8x128xf32>
      %66 = arith.mulf %65, %29 : vector<8x128xf32>
      %67 = arith.subf %64, %66 : vector<8x128xf32>
      %cst_27 = arith.constant 9.82289314 : f32
      %68 = vector.broadcast %cst_27 : f32 to vector<8x128xf32>
      %69 = arith.mulf %68, %44 : vector<8x128xf32>
      %70 = arith.addf %67, %69 : vector<8x128xf32>
      %cst_28 = arith.constant 0.290809333 : f32
      %71 = vector.broadcast %cst_28 : f32 to vector<8x128xf32>
      %72 = arith.mulf %71, %62 : vector<8x128xf32>
      %73 = arith.subf %70, %72 : vector<8x128xf32>
      %74 = vector.broadcast %cst : f32 to vector<8x128xf32>
      %75 = arith.mulf %74, %73 : vector<8x128xf32>
      %76 = arith.addf %arg8, %75 : vector<8x128xf32>
      %77 = arith.truncf %76 : vector<8x128xf32> to vector<8x128xbf16>
      %cst_29 = arith.constant dense<0.000000e+00> : vector<8x128xf32>
      %78 = tpu.matmul %77, %0, %cst_29 {dimension_numbers = #tpu.dot_dimension_numbers<[1], [0], [0], [1], [0, 0, 1, 1], [], []>} : vector<8x128xbf16>, vector<128x128xbf16>, vector<8x128xf32> -> vector<8x128xf32>
      %79 = arith.addf %78, %4 : vector<8x128xf32>
      %80 = arith.truncf %79 : vector<8x128xf32> to vector<8x128xbf16>
      %81 = math.tanh %80 : vector<8x128xbf16>
      %cst_30 = arith.constant dense<0.000000e+00> : vector<8x128xf32>
      %82 = tpu.matmul %81, %1, %cst_30 {dimension_numbers = #tpu.dot_dimension_numbers<[1], [0], [0], [1], [0, 0, 1, 1], [], []>} : vector<8x128xbf16>, vector<128x128xbf16>, vector<8x128xf32> -> vector<8x128xf32>
      %83 = arith.addf %82, %7 : vector<8x128xf32>
      %cst_31 = arith.constant 2.84627533 : f32
      %84 = vector.broadcast %cst_31 : f32 to vector<8x128xf32>
      %85 = arith.mulf %84, %18 : vector<8x128xf32>
      %cst_32 = arith.constant 10.757576 : f32
      %86 = vector.broadcast %cst_32 : f32 to vector<8x128xf32>
      %87 = arith.mulf %86, %29 : vector<8x128xf32>
      %88 = arith.subf %85, %87 : vector<8x128xf32>
      %cst_33 = arith.constant 8.90642261 : f32
      %89 = vector.broadcast %cst_33 : f32 to vector<8x128xf32>
      %90 = arith.mulf %89, %44 : vector<8x128xf32>
      %91 = arith.addf %88, %90 : vector<8x128xf32>
      %cst_34 = arith.constant 0.278409094 : f32
      %92 = vector.broadcast %cst_34 : f32 to vector<8x128xf32>
      %93 = arith.mulf %92, %62 : vector<8x128xf32>
      %94 = arith.addf %91, %93 : vector<8x128xf32>
      %cst_35 = arith.constant 0.273531318 : f32
      %95 = vector.broadcast %cst_35 : f32 to vector<8x128xf32>
      %96 = arith.mulf %95, %83 : vector<8x128xf32>
      %97 = arith.subf %94, %96 : vector<8x128xf32>
      %98 = vector.broadcast %cst : f32 to vector<8x128xf32>
      %99 = arith.mulf %98, %97 : vector<8x128xf32>
      %100 = arith.addf %arg8, %99 : vector<8x128xf32>
      %101 = arith.truncf %100 : vector<8x128xf32> to vector<8x128xbf16>
      %cst_36 = arith.constant dense<0.000000e+00> : vector<8x128xf32>
      %102 = tpu.matmul %101, %0, %cst_36 {dimension_numbers = #tpu.dot_dimension_numbers<[1], [0], [0], [1], [0, 0, 1, 1], [], []>} : vector<8x128xbf16>, vector<128x128xbf16>, vector<8x128xf32> -> vector<8x128xf32>
      %103 = arith.addf %102, %4 : vector<8x128xf32>
      %104 = arith.truncf %103 : vector<8x128xf32> to vector<8x128xbf16>
      %105 = math.tanh %104 : vector<8x128xbf16>
      %cst_37 = arith.constant dense<0.000000e+00> : vector<8x128xf32>
      %106 = tpu.matmul %105, %1, %cst_37 {dimension_numbers = #tpu.dot_dimension_numbers<[1], [0], [0], [1], [0, 0, 1, 1], [], []>} : vector<8x128xbf16>, vector<128x128xbf16>, vector<8x128xf32> -> vector<8x128xf32>
      %107 = arith.addf %106, %7 : vector<8x128xf32>
      %cst_38 = arith.constant 0.0911458358 : f32
      %108 = vector.broadcast %cst_38 : f32 to vector<8x128xf32>
      %109 = arith.mulf %108, %18 : vector<8x128xf32>
      %cst_39 = arith.constant 0.449236304 : f32
      %110 = vector.broadcast %cst_39 : f32 to vector<8x128xf32>
      %111 = arith.mulf %110, %44 : vector<8x128xf32>
      %112 = arith.addf %109, %111 : vector<8x128xf32>
      %cst_40 = arith.constant 0.651041686 : f32
      %113 = vector.broadcast %cst_40 : f32 to vector<8x128xf32>
      %114 = arith.mulf %113, %62 : vector<8x128xf32>
      %115 = arith.addf %112, %114 : vector<8x128xf32>
      %cst_41 = arith.constant 0.322376192 : f32
      %116 = vector.broadcast %cst_41 : f32 to vector<8x128xf32>
      %117 = arith.mulf %116, %83 : vector<8x128xf32>
      %118 = arith.subf %115, %117 : vector<8x128xf32>
      %cst_42 = arith.constant 0.130952388 : f32
      %119 = vector.broadcast %cst_42 : f32 to vector<8x128xf32>
      %120 = arith.mulf %119, %107 : vector<8x128xf32>
      %121 = arith.addf %118, %120 : vector<8x128xf32>
      %122 = vector.broadcast %cst : f32 to vector<8x128xf32>
      %123 = arith.mulf %122, %121 : vector<8x128xf32>
      %124 = arith.addf %arg8, %123 : vector<8x128xf32>
      scf.yield %124 : vector<8x128xf32>
    }
    %c0_9 = arith.constant 0 : index
    %c0_10 = arith.constant 0 : index
    %11 = vector.load %arg6[%c0_9, %c0_10] : memref<8x128xf32, #tpu.memory_space<vmem>>, vector<8x128xf32>
    tpu.vector_store %arg6[%c0_9, %c0_10], %10 {strides = array<i32>} : memref<8x128xf32, #tpu.memory_space<vmem>>, vector<8x128xf32>,
    return
  }
  func.func @transform_0(%arg0: i32) -> (i32, i32) {
    %c0_i32 = arith.constant 0 : i32
    %c0_i32_0 = arith.constant 0 : i32
    return %arg0, %c0_i32 : i32, i32
  }
  func.func @transform_1(%arg0: i32) -> (i32, i32) {
    %c0_i32 = arith.constant 0 : i32
    %c0_i32_0 = arith.constant 0 : i32
    %c0_i32_1 = arith.constant 0 : i32
    return %c0_i32, %c0_i32_0 : i32, i32
  }
  func.func @transform_2(%arg0: i32) -> (i32, i32) {
    %c0_i32 = arith.constant 0 : i32
    %c0_i32_0 = arith.constant 0 : i32
    %c0_i32_1 = arith.constant 0 : i32
    return %c0_i32, %c0_i32_0 : i32, i32
  }
  func.func @transform_3(%arg0: i32) -> (i32, i32) {
    %c0_i32 = arith.constant 0 : i32
    %c0_i32_0 = arith.constant 0 : i32
    %c0_i32_1 = arith.constant 0 : i32
    return %c0_i32, %c0_i32_0 : i32, i32
  }
  func.func @transform_4(%arg0: i32) -> (i32, i32) {
    %c0_i32 = arith.constant 0 : i32
    %c0_i32_0 = arith.constant 0 : i32
    %c0_i32_1 = arith.constant 0 : i32
    return %c0_i32, %c0_i32_0 : i32, i32
  }
  func.func @transform_5(%arg0: i32) -> (i32, i32) {
    %c0_i32 = arith.constant 0 : i32
    %c0_i32_0 = arith.constant 0 : i32
    return %arg0, %c0_i32 : i32, i32
  }
}

</mosaic_0001>

<llo_original>
// kernel: tpu_custom_call.1
$region0: #{tpu_custom_call.1}
  #allocation0 [shape = 'u32[]', space=smem, size = 0x4, offset = 0x4, fixed_abs, tag = 'smem constant byte address 0x4 - core index']
  #allocation1 [shape = 'u32[72,128]{1,0:T(1,128)}', space=vmem, size = 0x9000, scoped, tag = 'internal scratch']
  %s0 = inlined_call_operand.hbm [shape: f32[16,128], index: 0, kind: input, shape index: {}]
  %s1 = inlined_call_operand.hbm [shape: bf16[128,128], index: 1, kind: input, shape index: {}]
  %s2 = inlined_call_operand.vmem [shape: f32[1,128], index: 2, kind: input, shape index: {}]
  %s3 = inlined_call_operand.hbm [shape: bf16[128,128], index: 3, kind: input, shape index: {}]
  %s4 = inlined_call_operand.vmem [shape: f32[1,128], index: 4, kind: input, shape index: {}]
  %s5 = inlined_call_operand.hbm [shape: f32[16,128], index: 5, kind: output, shape index: {}]
  %s6 = sld [smem:[#allocation0]]
  $region72: #{tpu_custom_call.1} parent=0
    _
  %s8 = ssub.s32 1, %s6
  %s9 = scalar_select 0, %s8, %s6
  $region1: #{tpu_custom_call.1} parent=0
    #allocation2 [shape = 'u8[8192]{0}', space=vmem, size = 0x2000, scoped, tag = 'input window, operand 0']
    #allocation3 [shape = 's32[2]{0}', space=sflag, size = 0x8, scoped, tag = 'scoped memory for tpu_custom_call.1']
    #allocation4 [shape = 's32[2]{0}', space=sflag, size = 0x8, scoped, tag = 'scoped memory for tpu_custom_call.1']
    #allocation5 [shape = 'u8[32768]{0}', space=vmem, size = 0x8000, scoped, tag = 'input window, operand 1, single buffered']
    #allocation6 [shape = 's32[1]{0}', space=sflag, size = 0x4, scoped, tag = 'scoped memory for tpu_custom_call.1']
    #allocation7 [shape = 'u8[32768]{0}', space=vmem, size = 0x8000, scoped, tag = 'input window, operand 3, single buffered']
    #allocation8 [shape = 'u8[8192]{0}', space=vmem, size = 0x2000, scoped, tag = 'output window, operand 0']
    %10 = vsyncpa [#allocation3], 0
    %s11 = scalar_lea.sflag [#allocation3], 1
    %12 = vsyncpa %s11, 0
    %13 = vsyncpa [#allocation6], 0
    %14 = vsyncpa [#allocation4], 0
    %s15 = scalar_lea.sflag [#allocation4], 1
    %16 = vsyncpa %s15, 0
    loop: start=0, step=1, limit=4
    $region2: #{tpu_custom_call.1} parent=1 // loop_pre_header
      _
    $region3: #{tpu_custom_call.1} parent=1 // loop_header
      %s18 = sphi 0, %s22
      %p19 = scmp.ge.s32.totalorder %s18, 4
      %s28 = sphi 0, %s30
      %s31 = sphi 0, %s28
      %s32 = sphi 0, %s31
      %s48 = sphi 0, %s32
      %s52 = sphi 0, %s52
      %s54 = sphi 0, %s52
      %s55 = sphi 0, %s54
      %s69 = sphi 0, %s55
      %s73 = sphi 0, %s73
      %s75 = sphi 0, %s73
      %s76 = sphi 0, %s75
      %s90 = sphi 0, %s76
      %s94 = sphi 0, %s94
      %s96 = sphi 0, %s94
      %s97 = sphi 0, %s96
      %s111 = sphi 0, %s97
      %s115 = sphi 0, %s115
      %s117 = sphi 0, %s115
      %s118 = sphi 0, %s117
      %s132 = sphi 0, %s118
      %s138 = sphi 0, %s140
      %s141 = sphi 0, %s138
      %s142 = sphi 0, %s141
      %s158 = sphi 0, %s142
    $region4: #{tpu_custom_call.1} parent=1 // loop_header_branch
      %21 = sbr.rel (%p19) target = $region8
    $region5: #{tpu_custom_call.1} parent=1 // loop_body
      %s23 = ssub.s32 %s18, 1
      %s24 = ssub.s32 %s18, 2
      %s25 = sadd.s32 %s18, 1
      %s26 = ssub.s32 %s18, %s25
      %p27 = scmp.eq.s32.totalorder %s26, 0
      %s29 = sadd.s32 %s28, 1
      %s30 = scalar_select %p27, %s28, %s29
      %p33 = pneg %p27
      %p34 = scmp.eq.s32.totalorder %s18, 1
      %p35 = por %p33, %p34
      %p36 = scmp.ne.s32.totalorder %s28, %s31
      %p37 = scmp.eq.s32.totalorder %s18, 0
      %p38 = por %p36, %p37
      %p39 = scmp.ne.s32.totalorder %s28, %s31
      %p40 = scmp.eq.s32.totalorder %s23, 1
      %p41 = por %p39, %p40
      %p42 = scmp.ne.s32.totalorder %s31, %s32
      %p43 = scmp.eq.s32.totalorder %s23, 0
      %p44 = por %p42, %p43
      %p45 = scmp.ne.s32.totalorder %s31, %s32
      %p46 = scmp.eq.s32.totalorder %s24, 1
      %p47 = por %p45, %p46
      %p49 = scmp.ne.s32.totalorder %s32, %s48
      %p50 = scmp.eq.s32.totalorder %s24, 0
      %p51 = por %p49, %p50
      %s53 = sadd.s32 %s52, 1
      %p56 = scmp.eq.s32.totalorder %s18, 1
      %p57 = scmp.ne.s32.totalorder %s52, %s54
      %p58 = scmp.eq.s32.totalorder %s18, 0
      %p59 = por %p57, %p58
      %p60 = scmp.ne.s32.totalorder %s52, %s54
      %p61 = scmp.eq.s32.totalorder %s23, 1
      %p62 = por %p60, %p61
      %p63 = scmp.ne.s32.totalorder %s54, %s55
      %p64 = scmp.eq.s32.totalorder %s23, 0
      %p65 = por %p63, %p64
      %p66 = scmp.ne.s32.totalorder %s54, %s55
      %p67 = scmp.eq.s32.totalorder %s24, 1
      %p68 = por %p66, %p67
      %p70 = scmp.ne.s32.totalorder %s55, %s69
      %p71 = scmp.eq.s32.totalorder %s24, 0
      %p72 = por %p70, %p71
      %s74 = sadd.s32 %s73, 1
      %p77 = scmp.eq.s32.totalorder %s18, 1
      %p78 = scmp.ne.s32.totalorder %s73, %s75
      %p79 = scmp.eq.s32.totalorder %s18, 0
      %p80 = por %p78, %p79
      %p81 = scmp.ne.s32.totalorder %s73, %s75
      %p82 = scmp.eq.s32.totalorder %s23, 1
      %p83 = por %p81, %p82
      %p84 = scmp.ne.s32.totalorder %s75, %s76
      %p85 = scmp.eq.s32.totalorder %s23, 0
      %p86 = por %p84, %p85
      %p87 = scmp.ne.s32.totalorder %s75, %s76
      %p88 = scmp.eq.s32.totalorder %s24, 1
      %p89 = por %p87, %p88
      %p91 = scmp.ne.s32.totalorder %s76, %s90
      %p92 = scmp.eq.s32.totalorder %s24, 0
      %p93 = por %p91, %p92
      %s95 = sadd.s32 %s94, 1
      %p98 = scmp.eq.s32.totalorder %s18, 1
      %p99 = scmp.ne.s32.totalorder %s94, %s96
      %p100 = scmp.eq.s32.totalorder %s18, 0
      %p101 = por %p99, %p100
      %p102 = scmp.ne.s32.totalorder %s94, %s96
      %p103 = scmp.eq.s32.totalorder %s23, 1
      %p104 = por %p102, %p103
      %p105 = scmp.ne.s32.totalorder %s96, %s97
      %p106 = scmp.eq.s32.totalorder %s23, 0
      %p107 = por %p105, %p106
      %p108 = scmp.ne.s32.totalorder %s96, %s97
      %p109 = scmp.eq.s32.totalorder %s24, 1
      %p110 = por %p108, %p109
      %p112 = scmp.ne.s32.totalorder %s97, %s111
      %p113 = scmp.eq.s32.totalorder %s24, 0
      %p114 = por %p112, %p113
      %s116 = sadd.s32 %s115, 1
      %p119 = scmp.eq.s32.totalorder %s18, 1
      %p120 = scmp.ne.s32.totalorder %s115, %s117
      %p121 = scmp.eq.s32.totalorder %s18, 0
      %p122 = por %p120, %p121
      %p123 = scmp.ne.s32.totalorder %s115, %s117
      %p124 = scmp.eq.s32.totalorder %s23, 1
      %p125 = por %p123, %p124
      %p126 = scmp.ne.s32.totalorder %s117, %s118
      %p127 = scmp.eq.s32.totalorder %s23, 0
      %p128 = por %p126, %p127
      %p129 = scmp.ne.s32.totalorder %s117, %s118
      %p130 = scmp.eq.s32.totalorder %s24, 1
      %p131 = por %p129, %p130
      %p133 = scmp.ne.s32.totalorder %s118, %s132
      %p134 = scmp.eq.s32.totalorder %s24, 0
      %p135 = por %p133, %p134
      %s136 = ssub.s32 %s18, %s25
      %p137 = scmp.eq.s32.totalorder %s136, 0
      %s139 = sadd.s32 %s138, 1
      %s140 = scalar_select %p137, %s138, %s139
      %p143 = pneg %p137
      %p144 = scmp.eq.s32.totalorder %s18, 1
      %p145 = por %p143, %p144
      %p146 = scmp.ne.s32.totalorder %s138, %s141
      %p147 = scmp.eq.s32.totalorder %s18, 0
      %p148 = por %p146, %p147
      %p149 = scmp.ne.s32.totalorder %s138, %s141
      %p150 = scmp.eq.s32.totalorder %s23, 1
      %p151 = por %p149, %p150
      %p152 = scmp.ne.s32.totalorder %s141, %s142
      %p153 = scmp.eq.s32.totalorder %s23, 0
      %p154 = por %p152, %p153
      %p155 = scmp.ne.s32.totalorder %s141, %s142
      %p156 = scmp.eq.s32.totalorder %s24, 1
      %p157 = por %p155, %p156
      %p159 = scmp.ne.s32.totalorder %s142, %s158
      %p160 = scmp.eq.s32.totalorder %s24, 0
      %p161 = por %p159, %p160
      %p162 = scmp.le.s32.totalorder 1, %s18
      %p163 = scmp.lt.s32.totalorder %s18, 3
      %p164 = pnand %p162, %p163
      %p165 = pneg %p164
      // Predicated region
      $region9: #{tpu_custom_call.1} parent=5 // pred_check
        _
      $region10: #{tpu_custom_call.1} parent=5 // pred_check_branch
        %167 = sbr.rel (%p164) target = $region12
      $region11: #{tpu_custom_call.1} parent=5 // pred_region
        %s168 = ssub.s32 %s18, 1
        // Predicated region
        $region13: #{tpu_custom_call.1} parent=11 // pred_check
          %p169 = pneg %p65
        $region14: #{tpu_custom_call.1} parent=11 // pred_check_branch
          %171 = sbr.rel (%p169) target = $region16
        $region15: #{tpu_custom_call.1} parent=11 // pred_region
          %173 = vsyncadd [#allocation6], 0
          %s174 = sshll.u32 %s1, 4
          %s175 = int_to_ptr.hbm [resolvable:$true] %s174
          %s176 = sshll.u32 [#allocation5], 4
          %s177 = int_to_ptr.vmem [resolvable:$true] %s176
          %182 = dma.hbm_to_vmem [thread:$0]  %s175, 1024, %s177, [#allocation6], 64, 64, 4
        $region16: #{tpu_custom_call.1} parent=11 // pred_fallthru
          _
        // Predicated region
        $region17: #{tpu_custom_call.1} parent=11 // pred_check
          %p183 = pneg %p86
        $region18: #{tpu_custom_call.1} parent=11 // pred_check_branch
          %185 = sbr.rel (%p183) target = $region20
        $region19: #{tpu_custom_call.1} parent=11 // pred_region
          _
        $region20: #{tpu_custom_call.1} parent=11 // pred_fallthru
          _
        // Predicated region
        $region21: #{tpu_custom_call.1} parent=11 // pred_check
          %p186 = pneg %p107
        $region22: #{tpu_custom_call.1} parent=11 // pred_check_branch
          %188 = sbr.rel (%p186) target = $region24
        $region23: #{tpu_custom_call.1} parent=11 // pred_region
          %190 = vsyncadd [#allocation6], 0
          %s191 = sshll.u32 %s3, 4
          %s192 = int_to_ptr.hbm [resolvable:$true] %s191
          %s193 = sshll.u32 [#allocation7], 4
          %s194 = int_to_ptr.vmem [resolvable:$true] %s193
          %199 = dma.hbm_to_vmem [thread:$0]  %s192, 1024, %s194, [#allocation6], 64, 64, 4
        $region24: #{tpu_custom_call.1} parent=11 // pred_fallthru
          _
        // Predicated region
        $region25: #{tpu_custom_call.1} parent=11 // pred_check
          %p200 = pneg %p128
        $region26: #{tpu_custom_call.1} parent=11 // pred_check_branch
          %202 = sbr.rel (%p200) target = $region28
        $region27: #{tpu_custom_call.1} parent=11 // pred_region
          _
        $region28: #{tpu_custom_call.1} parent=11 // pred_fallthru
          _
      $region12: #{tpu_custom_call.1} parent=5 // pred_fallthru
        _
      %p203 = scmp.lt.s32.totalorder %s18, 2
      // Predicated region
      $region29: #{tpu_custom_call.1} parent=5 // pred_check
        %p204 = pneg %p203
      $region30: #{tpu_custom_call.1} parent=5 // pred_check_branch
        %206 = sbr.rel (%p204) target = $region32
      $region31: #{tpu_custom_call.1} parent=5 // pred_region
        // Predicated region
        $region33: #{tpu_custom_call.1} parent=31 // pred_check
          %p207 = pneg %p38
        $region34: #{tpu_custom_call.1} parent=31 // pred_check_branch
          %209 = sbr.rel (%p207) target = $region36
        $region35: #{tpu_custom_call.1} parent=31 // pred_region
          %s210 = sand.u32 %s28, 1
          %s211 = scalar_lea.sflag [#allocation3], %s210
          %s212 = sand.u32 %s28, 1
          %s213 = smul.addr %s212, 8
          %s214 = scalar_lea.vmem [#allocation2], %s213
          %216 = vsyncadd %s211, 0
          %s217 = smul.addr %s18, 8
          %s218 = scalar_lea.hbm %s0, %s217
          %s220 = sshll.u32 %s218, 4
          %s221 = int_to_ptr.hbm [resolvable:$true] %s220
          %s222 = sshll.u32 %s214, 4
          %s223 = int_to_ptr.vmem [resolvable:$true] %s222
          %225 = dma.hbm_to_vmem [thread:$0]  %s221, 128, %s223, %s211
        $region36: #{tpu_custom_call.1} parent=31 // pred_fallthru
          _
      $region32: #{tpu_custom_call.1} parent=5 // pred_fallthru
        _
      %p226 = scmp.le.s32.totalorder 1, %s18
      %p227 = scmp.lt.s32.totalorder %s18, 3
      %p228 = pnand %p226, %p227
      %p229 = pneg %p228
      // Predicated region
      $region37: #{tpu_custom_call.1} parent=5 // pred_check
        _
      $region38: #{tpu_custom_call.1} parent=5 // pred_check_branch
        %231 = sbr.rel (%p228) target = $region40
      $region39: #{tpu_custom_call.1} parent=5 // pred_region
        %s232 = ssub.s32 %s18, 1
        %s233 = sand.u32 %s31, 1
        %s234 = scalar_lea.sflag [#allocation3], %s233
        %s235 = sand.u32 %s31, 1
        %s236 = smul.addr %s235, 8
        %s237 = scalar_lea.vmem [#allocation2], %s236
        // Predicated region
        $region41: #{tpu_custom_call.1} parent=39 // pred_check
          %p238 = pneg %p44
        $region42: #{tpu_custom_call.1} parent=39 // pred_check_branch
          %240 = sbr.rel (%p238) target = $region44
        $region43: #{tpu_custom_call.1} parent=39 // pred_region
          %242 = dma.done %s234, 128
        $region44: #{tpu_custom_call.1} parent=39 // pred_fallthru
          _
        // Predicated region
        $region45: #{tpu_custom_call.1} parent=39 // pred_check
          %p243 = pneg %p65
        $region46: #{tpu_custom_call.1} parent=39 // pred_check_branch
          %245 = sbr.rel (%p243) target = $region48
        $region47: #{tpu_custom_call.1} parent=39 // pred_region
          %247 = dma.done [#allocation6], 1024
        $region48: #{tpu_custom_call.1} parent=39 // pred_fallthru
          _
        // Predicated region
        $region49: #{tpu_custom_call.1} parent=39 // pred_check
          %p248 = pneg %p107
        $region50: #{tpu_custom_call.1} parent=39 // pred_check_branch
          %250 = sbr.rel (%p248) target = $region52
        $region51: #{tpu_custom_call.1} parent=39 // pred_region
          %252 = dma.done [#allocation6], 1024
        $region52: #{tpu_custom_call.1} parent=39 // pred_fallthru
          _
        %s253 = sand.u32 %s31, 1
        %s254 = scalar_lea.sflag [#allocation3], %s253
        %s255 = sand.u32 %s31, 1
        %s256 = smul.addr %s255, 8
        %s257 = scalar_lea.vmem [#allocation2], %s256
        %p258 = pneg %p44
        %p259 = pneg %p41
        %p260 = pneg %p65
        %p261 = pneg %p62
        %p262 = pneg %p86
        %p263 = pneg %p83
        %p264 = pneg %p107
        %p265 = pneg %p104
        %p266 = pneg %p128
        %p267 = pneg %p125
        %p268 = pneg %p154
        %p269 = pneg %p151
        %s270 = sand.u32 %s141, 1
        %s271 = scalar_lea.sflag [#allocation4], %s270
        %s272 = sand.u32 %s141, 1
        %s273 = smul.addr %s272, 8
        %s274 = scalar_lea.vmem [#allocation8], %s273
        %v275 = vld [vmem:[#allocation5] sm:$0xf]
        %v276 = vld [vmem:[#allocation5 + $0x4] sm:$0xf]
        %v277 = vld [vmem:[#allocation5 + $0x8] sm:$0xf]
        %v278 = vld [vmem:[#allocation5 + $0xc] sm:$0xf]
        %v279 = vld [vmem:[#allocation5 + $0x10] sm:$0xf]
        %v280 = vld [vmem:[#allocation5 + $0x14] sm:$0xf]
        %v281 = vld [vmem:[#allocation5 + $0x18] sm:$0xf]
        %v282 = vld [vmem:[#allocation5 + $0x1c] sm:$0xf]
        %v283 = vld [vmem:[#allocation5 + $0x20] sm:$0xf]
        %v284 = vld [vmem:[#allocation5 + $0x24] sm:$0xf]
        %v285 = vld [vmem:[#allocation5 + $0x28] sm:$0xf]
        %v286 = vld [vmem:[#allocation5 + $0x2c] sm:$0xf]
        %v287 = vld [vmem:[#allocation5 + $0x30] sm:$0xf]
        %v288 = vld [vmem:[#allocation5 + $0x34] sm:$0xf]
        %v289 = vld [vmem:[#allocation5 + $0x38] sm:$0xf]
        %v290 = vld [vmem:[#allocation5 + $0x3c] sm:$0xf]
        %v291 = vld [vmem:[#allocation7] sm:$0xf]
        %v292 = vld [vmem:[#allocation7 + $0x4] sm:$0xf]
        %v293 = vld [vmem:[#allocation7 + $0x8] sm:$0xf]
        %v294 = vld [vmem:[#allocation7 + $0xc] sm:$0xf]
        %v295 = vld [vmem:[#allocation7 + $0x10] sm:$0xf]
        %v296 = vld [vmem:[#allocation7 + $0x14] sm:$0xf]
        %v297 = vld [vmem:[#allocation7 + $0x18] sm:$0xf]
        %v298 = vld [vmem:[#allocation7 + $0x1c] sm:$0xf]
        %v299 = vld [vmem:[#allocation7 + $0x20] sm:$0xf]
        %v300 = vld [vmem:[#allocation7 + $0x24] sm:$0xf]
        %v301 = vld [vmem:[#allocation7 + $0x28] sm:$0xf]
        %v302 = vld [vmem:[#allocation7 + $0x2c] sm:$0xf]
        %v303 = vld [vmem:[#allocation7 + $0x30] sm:$0xf]
        %v304 = vld [vmem:[#allocation7 + $0x34] sm:$0xf]
        %v305 = vld [vmem:[#allocation7 + $0x38] sm:$0xf]
        %v306 = vld [vmem:[#allocation7 + $0x3c] sm:$0xf]
        %v307 = vld [vmem:[%s2] sm:$0x1]
        %v309 = vperm.slane %v307, 0
        %v311 = vld [vmem:[%s4] sm:$0x1]
        %v313 = vperm.slane %v311, 0
        %v315 = vld [vmem:[%s237] sm:$0xff]
        loop: start=0, step=1, limit=32
        $region53: #{tpu_custom_call.1} parent=39 // loop_pre_header
          _
        $region54: #{tpu_custom_call.1} parent=39 // loop_header
          %s317 = sphi 0, %s321
          %p318 = scmp.ge.s32.totalorder %s317, 32
          %v322 = vphi %v315, %v649
        $region55: #{tpu_custom_call.1} parent=39 // loop_header_branch
          %320 = sbr.rel (%p318) target = $region59
        $region56: #{tpu_custom_call.1} parent=39 // loop_body
          %v323 = vpack.c.bf16 %v322, %v322
          %v340 = vunpack.c.l.b16 %v275
          %v341 = vunpack.c.l.b16 %v276
          %v342 = vunpack.c.l.b16 %v277
          %v343 = vunpack.c.l.b16 %v278
          %v344 = vunpack.c.l.b16 %v279
          %v345 = vunpack.c.l.b16 %v280
          %v346 = vunpack.c.l.b16 %v281
          %v347 = vunpack.c.l.b16 %v282
          %v348 = vunpack.c.l.b16 %v283
          %v349 = vunpack.c.l.b16 %v284
          %v350 = vunpack.c.l.b16 %v285
          %v351 = vunpack.c.l.b16 %v286
          %v352 = vunpack.c.l.b16 %v287
          %v353 = vunpack.c.l.b16 %v288
          %v354 = vunpack.c.l.b16 %v289
          %v355 = vunpack.c.l.b16 %v290
          %v356 = vpack.c.b16 %v341, %v340
          %v357 = vpack.c.b16 %v343, %v342
          %v358 = vpack.c.b16 %v345, %v344
          %v359 = vpack.c.b16 %v347, %v346
          %v360 = vpack.c.b16 %v349, %v348
          %v361 = vpack.c.b16 %v351, %v350
          %v362 = vpack.c.b16 %v353, %v352
          %v363 = vpack.c.b16 %v355, %v354
          %372 = vmatpush.bf16.msra.mxu0 %v363
          %373 = vmatpush.bf16.msra.mxu0 %v362
          %374 = vmatpush.bf16.msra.mxu0 %v361
          %375 = vmatpush.bf16.msra.mxu0 %v360
          %376 = vmatpush.bf16.msra.mxu0 %v359
          %377 = vmatpush.bf16.msra.mxu0 %v358
          %378 = vmatpush.bf16.msra.mxu0 %v357
          %379 = vmatpush.bf16.msra.mxu0 %v356
          %380 = vmatmul.bf16.gmra.mxu0 %v323
          %v381 = vpop.f32.mrf.mxu0
          %v382 = vadd.f32 %v309, %v381
          %v383 = vpop.f32.mrf.mxu0
          %384 = vdwg.mxu0
          %v385 = vpack.c.bf16 %v382, %v382
          %v386 = vunpack.c.l.bf16 %v385
          %v387 = vtanh.pop %v386
          %v388 = vpack.c.bf16 %v387, %v387
          %v405 = vunpack.c.l.b16 %v291
          %v406 = vunpack.c.l.b16 %v292
          %v407 = vunpack.c.l.b16 %v293
          %v408 = vunpack.c.l.b16 %v294
          %v409 = vunpack.c.l.b16 %v295
          %v410 = vunpack.c.l.b16 %v296
          %v411 = vunpack.c.l.b16 %v297
          %v412 = vunpack.c.l.b16 %v298
          %v413 = vunpack.c.l.b16 %v299
          %v414 = vunpack.c.l.b16 %v300
          %v415 = vunpack.c.l.b16 %v301
          %v416 = vunpack.c.l.b16 %v302
          %v417 = vunpack.c.l.b16 %v303
          %v418 = vunpack.c.l.b16 %v304
          %v419 = vunpack.c.l.b16 %v305
          %v420 = vunpack.c.l.b16 %v306
          %v421 = vpack.c.b16 %v406, %v405
          %v422 = vpack.c.b16 %v408, %v407
          %v423 = vpack.c.b16 %v410, %v409
          %v424 = vpack.c.b16 %v412, %v411
          %v425 = vpack.c.b16 %v414, %v413
          %v426 = vpack.c.b16 %v416, %v415
          %v427 = vpack.c.b16 %v418, %v417
          %v428 = vpack.c.b16 %v420, %v419
          %437 = vmatpush.bf16.msra.mxu0 %v428
          %438 = vmatpush.bf16.msra.mxu0 %v427
          %439 = vmatpush.bf16.msra.mxu0 %v426
          %440 = vmatpush.bf16.msra.mxu0 %v425
          %441 = vmatpush.bf16.msra.mxu0 %v424
          %442 = vmatpush.bf16.msra.mxu0 %v423
          %443 = vmatpush.bf16.msra.mxu0 %v422
          %444 = vmatpush.bf16.msra.mxu0 %v421
          %445 = vmatmul.bf16.gmra.mxu0 %v388
          %v446 = vpop.f32.mrf.mxu0
          %v447 = vadd.f32 %v313, %v446
          %v448 = vpop.f32.mrf.mxu0
          %449 = vdwg.mxu0
          %v450 = vmul.f32 %v447, 0.00625
          %v451 = vadd.f32 %v322, %v450
          %v452 = vpack.c.bf16 %v451, %v451
          %453 = vmatpush.bf16.msra.mxu0 %v363
          %454 = vmatpush.bf16.msra.mxu0 %v362
          %455 = vmatpush.bf16.msra.mxu0 %v361
          %456 = vmatpush.bf16.msra.mxu0 %v360
          %457 = vmatpush.bf16.msra.mxu0 %v359
          %458 = vmatpush.bf16.msra.mxu0 %v358
          %459 = vmatpush.bf16.msra.mxu0 %v357
          %460 = vmatpush.bf16.msra.mxu0 %v356
          %461 = vmatmul.bf16.gmra.mxu0 %v452
          %v462 = vpop.f32.mrf.mxu0
          %v463 = vadd.f32 %v309, %v462
          %v464 = vpop.f32.mrf.mxu0
          %465 = vdwg.mxu0
          %v466 = vpack.c.bf16 %v463, %v463
          %v467 = vunpack.c.l.bf16 %v466
          %v468 = vtanh.pop %v467
          %v469 = vpack.c.bf16 %v468, %v468
          %470 = vmatpush.bf16.msra.mxu0 %v428
          %471 = vmatpush.bf16.msra.mxu0 %v427
          %472 = vmatpush.bf16.msra.mxu0 %v426
          %473 = vmatpush.bf16.msra.mxu0 %v425
          %474 = vmatpush.bf16.msra.mxu0 %v424
          %475 = vmatpush.bf16.msra.mxu0 %v423
          %476 = vmatpush.bf16.msra.mxu0 %v422
          %477 = vmatpush.bf16.msra.mxu0 %v421
          %478 = vmatmul.bf16.gmra.mxu0 %v469
          %v479 = vpop.f32.mrf.mxu0
          %v480 = vadd.f32 %v313, %v479
          %v481 = vpop.f32.mrf.mxu0
          %482 = vdwg.mxu0
          %v483 = vmul.f32 %v447, 0.075
          %v484 = vmul.f32 %v480, 0.225
          %v485 = vadd.f32 %v483, %v484
          %v486 = vmul.f32 %v485, 0.03125
          %v487 = vadd.f32 %v322, %v486
          %v488 = vpack.c.bf16 %v487, %v487
          %489 = vmatpush.bf16.msra.mxu0 %v363
          %490 = vmatpush.bf16.msra.mxu0 %v362
          %491 = vmatpush.bf16.msra.mxu0 %v361
          %492 = vmatpush.bf16.msra.mxu0 %v360
          %493 = vmatpush.bf16.msra.mxu0 %v359
          %494 = vmatpush.bf16.msra.mxu0 %v358
          %495 = vmatpush.bf16.msra.mxu0 %v357
          %496 = vmatpush.bf16.msra.mxu0 %v356
          %497 = vmatmul.bf16.gmra.mxu0 %v488
          %v498 = vpop.f32.mrf.mxu0
          %v499 = vadd.f32 %v309, %v498
          %v500 = vpop.f32.mrf.mxu0
          %501 = vdwg.mxu0
          %v502 = vpack.c.bf16 %v499, %v499
          %v503 = vunpack.c.l.bf16 %v502
          %v504 = vtanh.pop %v503
          %v505 = vpack.c.bf16 %v504, %v504
          %506 = vmatpush.bf16.msra.mxu0 %v428
          %507 = vmatpush.bf16.msra.mxu0 %v427
          %508 = vmatpush.bf16.msra.mxu0 %v426
          %509 = vmatpush.bf16.msra.mxu0 %v425
          %510 = vmatpush.bf16.msra.mxu0 %v424
          %511 = vmatpush.bf16.msra.mxu0 %v423
          %512 = vmatpush.bf16.msra.mxu0 %v422
          %513 = vmatpush.bf16.msra.mxu0 %v421
          %514 = vmatmul.bf16.gmra.mxu0 %v505
          %v515 = vpop.f32.mrf.mxu0
          %v516 = vadd.f32 %v313, %v515
          %v517 = vpop.f32.mrf.mxu0
          %518 = vdwg.mxu0
          %v519 = vmul.f32 %v447, 0.9777778
          %v520 = vmul.f32 %v480, 3.7333333
          %v521 = vsub.f32 %v519, %v520
          %v522 = vmul.f32 %v516, 3.5555556
          %v523 = vadd.f32 %v521, %v522
          %v524 = vmul.f32 %v523, 0.03125
          %v525 = vadd.f32 %v322, %v524
          %v526 = vpack.c.bf16 %v525, %v525
          %527 = vmatpush.bf16.msra.mxu0 %v363
          %528 = vmatpush.bf16.msra.mxu0 %v362
          %529 = vmatpush.bf16.msra.mxu0 %v361
          %530 = vmatpush.bf16.msra.mxu0 %v360
          %531 = vmatpush.bf16.msra.mxu0 %v359
          %532 = vmatpush.bf16.msra.mxu0 %v358
          %533 = vmatpush.bf16.msra.mxu0 %v357
          %534 = vmatpush.bf16.msra.mxu0 %v356
          %535 = vmatmul.bf16.gmra.mxu0 %v526
          %v536 = vpop.f32.mrf.mxu0
          %v537 = vadd.f32 %v309, %v536
          %v538 = vpop.f32.mrf.mxu0
          %539 = vdwg.mxu0
          %v540 = vpack.c.bf16 %v537, %v537
          %v541 = vunpack.c.l.bf16 %v540
          %v542 = vtanh.pop %v541
          %v543 = vpack.c.bf16 %v542, %v542
          %544 = vmatpush.bf16.msra.mxu0 %v428
          %545 = vmatpush.bf16.msra.mxu0 %v427
          %546 = vmatpush.bf16.msra.mxu0 %v426
          %547 = vmatpush.bf16.msra.mxu0 %v425
          %548 = vmatpush.bf16.msra.mxu0 %v424
          %549 = vmatpush.bf16.msra.mxu0 %v423
          %550 = vmatpush.bf16.msra.mxu0 %v422
          %551 = vmatpush.bf16.msra.mxu0 %v421
          %552 = vmatmul.bf16.gmra.mxu0 %v543
          %v553 = vpop.f32.mrf.mxu0
          %v554 = vadd.f32 %v313, %v553
          %v555 = vpop.f32.mrf.mxu0
          %556 = vdwg.mxu0
          %v557 = vmul.f32 %v447, 2.9525986
          %v558 = vmul.f32 %v480, 11.595794
          %v559 = vsub.f32 %v557, %v558
          %v560 = vmul.f32 %v516, 9.822893
          %v561 = vadd.f32 %v559, %v560
          %v562 = vmul.f32 %v554, 0.29080933
          %v563 = vsub.f32 %v561, %v562
          %v564 = vmul.f32 %v563, 0.03125
          %v565 = vadd.f32 %v322, %v564
          %v566 = vpack.c.bf16 %v565, %v565
          %567 = vmatpush.bf16.msra.mxu0 %v363
          %568 = vmatpush.bf16.msra.mxu0 %v362
          %569 = vmatpush.bf16.msra.mxu0 %v361
          %570 = vmatpush.bf16.msra.mxu0 %v360
          %571 = vmatpush.bf16.msra.mxu0 %v359
          %572 = vmatpush.bf16.msra.mxu0 %v358
          %573 = vmatpush.bf16.msra.mxu0 %v357
          %574 = vmatpush.bf16.msra.mxu0 %v356
          %575 = vmatmul.bf16.gmra.mxu0 %v566
          %v576 = vpop.f32.mrf.mxu0
          %v577 = vadd.f32 %v309, %v576
          %v578 = vpop.f32.mrf.mxu0
          %579 = vdwg.mxu0
          %v580 = vpack.c.bf16 %v577, %v577
          %v581 = vunpack.c.l.bf16 %v580
          %v582 = vtanh.pop %v581
          %v583 = vpack.c.bf16 %v582, %v582
          %584 = vmatpush.bf16.msra.mxu0 %v428
          %585 = vmatpush.bf16.msra.mxu0 %v427
          %586 = vmatpush.bf16.msra.mxu0 %v426
          %587 = vmatpush.bf16.msra.mxu0 %v425
          %588 = vmatpush.bf16.msra.mxu0 %v424
          %589 = vmatpush.bf16.msra.mxu0 %v423
          %590 = vmatpush.bf16.msra.mxu0 %v422
          %591 = vmatpush.bf16.msra.mxu0 %v421
          %592 = vmatmul.bf16.gmra.mxu0 %v583
          %v593 = vpop.f32.mrf.mxu0
          %v594 = vadd.f32 %v313, %v593
          %v595 = vpop.f32.mrf.mxu0
          %596 = vdwg.mxu0
          %v597 = vmul.f32 %v447, 2.8462753
          %v598 = vmul.f32 %v480, 10.757576
          %v599 = vsub.f32 %v597, %v598
          %v600 = vmul.f32 %v516, 8.906423
          %v601 = vadd.f32 %v599, %v600
          %v602 = vmul.f32 %v554, 0.2784091
          %v603 = vadd.f32 %v601, %v602
          %v604 = vmul.f32 %v594, 0.27353132
          %v605 = vsub.f32 %v603, %v604
          %v606 = vmul.f32 %v605, 0.03125
          %v607 = vadd.f32 %v322, %v606
          %v608 = vpack.c.bf16 %v607, %v607
          %609 = vmatpush.bf16.msra.mxu0 %v363
          %610 = vmatpush.bf16.msra.mxu0 %v362
          %611 = vmatpush.bf16.msra.mxu0 %v361
          %612 = vmatpush.bf16.msra.mxu0 %v360
          %613 = vmatpush.bf16.msra.mxu0 %v359
          %614 = vmatpush.bf16.msra.mxu0 %v358
          %615 = vmatpush.bf16.msra.mxu0 %v357
          %616 = vmatpush.bf16.msra.mxu0 %v356
          %617 = vmatmul.bf16.gmra.mxu0 %v608
          %v618 = vpop.f32.mrf.mxu0
          %v619 = vadd.f32 %v309, %v618
          %v620 = vpop.f32.mrf.mxu0
          %621 = vdwg.mxu0
          %v622 = vpack.c.bf16 %v619, %v619
          %v623 = vunpack.c.l.bf16 %v622
          %v624 = vtanh.pop %v623
          %v625 = vpack.c.bf16 %v624, %v624
          %626 = vmatpush.bf16.msra.mxu0 %v428
          %627 = vmatpush.bf16.msra.mxu0 %v427
          %628 = vmatpush.bf16.msra.mxu0 %v426
          %629 = vmatpush.bf16.msra.mxu0 %v425
          %630 = vmatpush.bf16.msra.mxu0 %v424
          %631 = vmatpush.bf16.msra.mxu0 %v423
          %632 = vmatpush.bf16.msra.mxu0 %v422
          %633 = vmatpush.bf16.msra.mxu0 %v421
          %634 = vmatmul.bf16.gmra.mxu0 %v625
          %v635 = vpop.f32.mrf.mxu0
          %v636 = vadd.f32 %v313, %v635
          %v637 = vpop.f32.mrf.mxu0
          %638 = vdwg.mxu0
          %v639 = vmul.f32 %v447, 0.091145836
          %v640 = vmul.f32 %v516, 0.4492363
          %v641 = vadd.f32 %v639, %v640
          %v642 = vmul.f32 %v554, 0.6510417
          %v643 = vadd.f32 %v641, %v642
          %v644 = vmul.f32 %v594, 0.3223762
          %v645 = vsub.f32 %v643, %v644
          %v646 = vmul.f32 %v636, 0.13095239
          %v647 = vadd.f32 %v645, %v646
          %v648 = vmul.f32 %v647, 0.03125
          %v649 = vadd.f32 %v322, %v648
        $region57: #{tpu_custom_call.1} parent=39 // loop_footer
          %s321 = sadd.s32 1, %s317
        $region58: #{tpu_custom_call.1} parent=39 // loop_footer_branch
          %316 = sbr.rel target = $region54
        $region59: #{tpu_custom_call.1} parent=39 // loop_exit
          _
        %650 = vst [vmem:[%s274] sm:$0xff] %v322
        %s651 = sand.u32 %s141, 1
        %s652 = scalar_lea.sflag [#allocation4], %s651
        %s653 = sand.u32 %s141, 1
        %s654 = smul.addr %s653, 8
        %s655 = scalar_lea.vmem [#allocation8], %s654
        // Predicated region
        $region60: #{tpu_custom_call.1} parent=39 // pred_check
          %p656 = pneg %p151
        $region61: #{tpu_custom_call.1} parent=39 // pred_check_branch
          %658 = sbr.rel (%p656) target = $region63
        $region62: #{tpu_custom_call.1} parent=39 // pred_region
          %660 = vsyncadd %s652, 0
          %s661 = smul.addr %s23, 8
          %s662 = scalar_lea.hbm %s5, %s661
          %s664 = sshll.u32 %s655, 4
          %s665 = int_to_ptr.vmem [resolvable:$true] %s664
          %s666 = sshll.u32 %s662, 4
          %s667 = int_to_ptr.hbm [resolvable:$true] %s666
          %669 = dma.vmem_to_hbm [thread:$0]  %s665, 128, %s667, %s652
        $region63: #{tpu_custom_call.1} parent=39 // pred_fallthru
          _
      $region40: #{tpu_custom_call.1} parent=5 // pred_fallthru
        _
      %p670 = scmp.le.s32.totalorder 2, %s18
      // Predicated region
      $region64: #{tpu_custom_call.1} parent=5 // pred_check
        %p671 = pneg %p670
      $region65: #{tpu_custom_call.1} parent=5 // pred_check_branch
        %673 = sbr.rel (%p671) target = $region67
      $region66: #{tpu_custom_call.1} parent=5 // pred_region
        %s674 = ssub.s32 %s18, 2
        // Predicated region
        $region68: #{tpu_custom_call.1} parent=66 // pred_check
          %p675 = pneg %p157
        $region69: #{tpu_custom_call.1} parent=66 // pred_check_branch
          %677 = sbr.rel (%p675) target = $region71
        $region70: #{tpu_custom_call.1} parent=66 // pred_region
          %s678 = sand.u32 %s142, 1
          %s679 = scalar_lea.sflag [#allocation4], %s678
          %s680 = sand.u32 %s142, 1
          %s681 = smul.addr %s680, 8
          %s682 = scalar_lea.vmem [#allocation8], %s681
          %684 = dma.done %s679, 128
        $region71: #{tpu_custom_call.1} parent=66 // pred_fallthru
          _
      $region67: #{tpu_custom_call.1} parent=5 // pred_fallthru
        _
    $region6: #{tpu_custom_call.1} parent=1 // loop_footer
      %s22 = sadd.s32 1, %s18
    $region7: #{tpu_custom_call.1} parent=1 // loop_footer_branch
      %17 = sbr.rel target = $region3
    $region8: #{tpu_custom_call.1} parent=1 // loop_exit
      _
    %685 = vsyncpa [#allocation3], 1
    %s686 = scalar_lea.sflag [#allocation3], 1
    %687 = vsyncpa %s686, 1
    %688 = vsyncpa [#allocation6], 1
    %689 = vsyncpa [#allocation4], 1
    %s690 = scalar_lea.sflag [#allocation4], 1
    %691 = vsyncpa %s690, 1

</llo_original>
